<compile_context>
chip_gen: v5e
topology: v5e:2x2
jax: 0.10.0
libtpu: 0.0.40
codegen_flags: <defaults>
</compile_context>

<pallas_src>
import jax
import jax.numpy as jnp
from jax.experimental import pallas as pl
from jax.experimental.pallas import tpu as pltpu

_LANES = 128
_TARGET_BLOCK_BYTES = 4 << 20     # ~4 MiB per block; in+out double-buffered ≈ 16 MiB
_VMEM_LIMIT_BYTES = 32 << 20      # headroom for v5e's 16 MiB scoped default


def _cdiv(a: int, b: int) -> int:
    return -(-a // b)


def _round_up(a: int, b: int) -> int:
    return _cdiv(a, b) * b


def _sublane_multiple(dtype) -> int:
    # Minimum sublane tile: 8 for 4-byte, 16 for 2-byte, 32 for 1-byte dtypes.
    return max(8, 32 // jnp.dtype(dtype).itemsize)


def _mish_kernel(x_ref, o_ref):
    # mish(x) = x * tanh(softplus(x)); tanh(softplus(x)) rewritten in terms of
    # e = exp(-|x|) in (0, 1] (overflow-free, one EUP exp + one reciprocal):
    #   x >= 0: tanh(sp) = (1 + 2e)   / (1 + 2e + 2e^2)
    #   x <  0: tanh(sp) = (2e + e^2) / (2 + 2e + e^2)
    x = x_ref[...].astype(jnp.float32)
    e = jnp.exp(-jnp.abs(x))
    e2 = e * e
    pos = x >= 0.0
    num = jnp.where(pos, 1.0 + 2.0 * e, 2.0 * e + e2)
    den = jnp.where(pos, 1.0 + 2.0 * e + 2.0 * e2, 2.0 + 2.0 * e + e2)
    o_ref[...] = (x * num * pl.reciprocal(den, approx=False)).astype(o_ref.dtype)


def _mish_2d(x2d: jax.Array) -> jax.Array:
    """Run the mish kernel over a (rows, 128) array."""
    rows, lanes = x2d.shape
    dtype = x2d.dtype
    itemsize = jnp.dtype(dtype).itemsize
    sub = _sublane_multiple(dtype)

    # Pick the block first (~4 MiB), then derive the grid from it.
    max_tr = max(sub, (_TARGET_BLOCK_BYTES // (lanes * itemsize)) // sub * sub)

    if rows <= max_tr:
        # Small-tensor fast path: one block covering the whole array
        # (block == full array dims, so no (8,128) divisibility constraint,
        # no padding, no per-step overhead).
        return pl.pallas_call(
            _mish_kernel,
            out_shape=jax.ShapeDtypeStruct((rows, lanes), dtype),
        )(x2d)

    tr = max_tr
    grid_n = _cdiv(rows, tr)
    # v7x has two TensorCores: an even number of grid steps balances them.
    # Only adjust when we already have >= 2 blocks, and never shrink the block
    # by more than ~1/3 of the target.
    if grid_n >= 2 and grid_n % 2 == 1:
        tr = max(sub, _round_up(_cdiv(rows, grid_n + 1), sub))
        grid_n = _cdiv(rows, tr)

    # rows need not be divisible by tr: the final block is a partial edge
    # block (OOB reads are unused garbage, edge writes are masked by Pallas).
    return pl.pallas_call(
        _mish_kernel,
        out_shape=jax.ShapeDtypeStruct((rows, lanes), dtype),
        grid=(grid_n,),
        in_specs=[pl.BlockSpec((tr, lanes), lambda i: (i, 0))],
        out_specs=pl.BlockSpec((tr, lanes), lambda i: (i, 0)),
        compiler_params=pltpu.CompilerParams(
            dimension_semantics=("parallel",),
            vmem_limit_bytes=_VMEM_LIMIT_BYTES,
        ),
    )(x2d)


def activation_lambda_mish(x: jax.Array) -> jax.Array:
    """Applies mish(x) = x * tanh(softplus(x)) elementwise via a Pallas kernel."""
    orig_shape = x.shape
    dtype = x.dtype
    n = x.size
    if n == 0:
        return x

    if n % _LANES == 0:
        # Aligned path (the common NCHW TextCNN case): no pad, no slice —
        # just a metadata reshape to (rows, 128) lane-dense layout.
        rows = n // _LANES
        out2d = _mish_2d(x.reshape(rows, _LANES))
        return out2d.reshape(orig_shape)

    itemsize = jnp.dtype(dtype).itemsize
    if n * itemsize <= _TARGET_BLOCK_BYTES:
        # Small & ragged: single whole-array block over a (1, n) view
        # (block == full array dims, so the lane dim need not be 128-aligned).
        out = pl.pallas_call(
            _mish_kernel,
            out_shape=jax.ShapeDtypeStruct((1, n), dtype),
        )(x.reshape(1, n))
        return out.reshape(orig_shape)

    # Large & ragged: pad only the final (<128-element) lane row.
    # TODO(synk): the pad and the trailing slice are each an extra HBM pass;
    # a masked tail store inside the kernel would remove them.
    rows = _cdiv(n, _LANES)
    padded_n = rows * _LANES
    flat = jnp.pad(x.reshape(-1), (0, padded_n - n))
    out2d = _mish_2d(flat.reshape(rows, _LANES))
    return out2d.reshape(-1)[:n].reshape(orig_shape)


def _mish_reference(x: jax.Array) -> jax.Array:
    xf = x.astype(jnp.float32)
    sp = jnp.maximum(xf, 0.0) + jnp.log1p(jnp.exp(-jnp.abs(xf)))
    return (xf * jnp.tanh(sp)).astype(x.dtype)


if __name__ == "__main__":
    key = jax.random.PRNGKey(0)
    # NCHW input, as the module would see it inside a TextCNN conv stack.
    x = jax.random.normal(key, (2, 4, 16, 16), dtype=jnp.float32)
    out = jax.block_until_ready(activation_lambda_mish(x))
    ref = _mish_reference(x)
    assert out.shape == x.shape
    assert out.dtype == x.dtype
    assert jnp.allclose(out, ref, atol=1e-5, rtol=1e-5)

    # Multi-block aligned path with a partial (masked) edge block:
    # 25*100*512 = 1,280,000 elements -> 10,000 rows of 128 lanes.
    xb = jax.random.normal(jax.random.PRNGKey(1), (25, 100, 512), dtype=jnp.float32)
    outb = jax.block_until_ready(activation_lambda_mish(xb))
    assert jnp.allclose(outb, _mish_reference(xb), atol=1e-5, rtol=1e-5)

    # Small ragged path (single full-array block, no padding).
    xr = jax.random.normal(jax.random.PRNGKey(2), (3, 5, 7, 11), dtype=jnp.float32)
    outr = jax.block_until_ready(activation_lambda_mish(xr))
    assert jnp.allclose(outr, _mish_reference(xr), atol=1e-5, rtol=1e-5)

    # bf16 path (sublane-minimum-tile handling).
    xh = jax.random.normal(jax.random.PRNGKey(3), (2, 8, 16, 16), dtype=jnp.bfloat16)
    outh = jax.block_until_ready(activation_lambda_mish(xh))
    assert outh.dtype == xh.dtype
    assert jnp.allclose(outh.astype(jnp.float32),
                        _mish_reference(xh).astype(jnp.float32),
                        atol=2e-2, rtol=2e-2)

    print("KERNEL_OK")
</pallas_src>

<mosaic_0001>
module attributes {stable_mosaic.version = 11 : i64} {
  func.func @_mish_kernel(%arg0: memref<16x128xf32, #tpu.memory_space<vmem>>, %arg1: memref<16x128xf32, #tpu.memory_space<vmem>>) attributes {dimension_semantics = [], scalar_prefetch = 0 : i64, scratch_operands = 0 : i64, tpu.core_type = #tpu.core_type<tc>} {
    %c0 = arith.constant 0 : index
    %c0_0 = arith.constant 0 : index
    %0 = vector.load %arg0[%c0, %c0_0] : memref<16x128xf32, #tpu.memory_space<vmem>>, vector<16x128xf32>
    %1 = math.absf %0 : vector<16x128xf32>
    %cst = arith.constant 0.000000e+00 : f32
    %2 = vector.broadcast %cst : f32 to vector<16x128xf32>
    %3 = arith.subf %2, %1 : vector<16x128xf32>
    %4 = math.exp %3 : vector<16x128xf32>
    %5 = arith.mulf %4, %4 : vector<16x128xf32>
    %cst_1 = arith.constant 0.000000e+00 : f32
    %6 = vector.broadcast %cst_1 : f32 to vector<16x128xf32>
    %7 = arith.cmpf oge, %0, %6 : vector<16x128xf32>
    %cst_2 = arith.constant 2.000000e+00 : f32
    %8 = vector.broadcast %cst_2 : f32 to vector<16x128xf32>
    %9 = arith.mulf %8, %4 : vector<16x128xf32>
    %cst_3 = arith.constant 1.000000e+00 : f32
    %10 = vector.broadcast %cst_3 : f32 to vector<16x128xf32>
    %11 = arith.addf %10, %9 : vector<16x128xf32>
    %cst_4 = arith.constant 2.000000e+00 : f32
    %12 = vector.broadcast %cst_4 : f32 to vector<16x128xf32>
    %13 = arith.mulf %12, %4 : vector<16x128xf32>
    %14 = arith.addf %13, %5 : vector<16x128xf32>
    %15 = arith.select %7, %11, %14 : vector<16x128xi1>, vector<16x128xf32>
    %cst_5 = arith.constant 2.000000e+00 : f32
    %16 = vector.broadcast %cst_5 : f32 to vector<16x128xf32>
    %17 = arith.mulf %16, %4 : vector<16x128xf32>
    %cst_6 = arith.constant 1.000000e+00 : f32
    %18 = vector.broadcast %cst_6 : f32 to vector<16x128xf32>
    %19 = arith.addf %18, %17 : vector<16x128xf32>
    %cst_7 = arith.constant 2.000000e+00 : f32
    %20 = vector.broadcast %cst_7 : f32 to vector<16x128xf32>
    %21 = arith.mulf %20, %5 : vector<16x128xf32>
    %22 = arith.addf %19, %21 : vector<16x128xf32>
    %cst_8 = arith.constant 2.000000e+00 : f32
    %23 = vector.broadcast %cst_8 : f32 to vector<16x128xf32>
    %24 = arith.mulf %23, %4 : vector<16x128xf32>
    %cst_9 = arith.constant 2.000000e+00 : f32
    %25 = vector.broadcast %cst_9 : f32 to vector<16x128xf32>
    %26 = arith.addf %25, %24 : vector<16x128xf32>
    %27 = arith.addf %26, %5 : vector<16x128xf32>
    %28 = arith.select %7, %22, %27 : vector<16x128xi1>, vector<16x128xf32>
    %29 = arith.mulf %0, %15 : vector<16x128xf32>
    %30 = tpu.reciprocal %28 : vector<16x128xf32> -> vector<16x128xf32>
    %31 = arith.mulf %29, %30 : vector<16x128xf32>
    %c0_10 = arith.constant 0 : index
    %c0_11 = arith.constant 0 : index
    %32 = vector.load %arg1[%c0_10, %c0_11] : memref<16x128xf32, #tpu.memory_space<vmem>>, vector<16x128xf32>
    tpu.vector_store %arg1[%c0_10, %c0_11], %31 {strides = array<i32>} : memref<16x128xf32, #tpu.memory_space<vmem>>, vector<16x128xf32>,
    return
  }
}

</mosaic_0001>

<llo_original>
// kernel: tpu_custom_call.1
$region0: #{tpu_custom_call.1}
  #allocation0 [shape = 'u32[]', space=smem, size = 0x4, offset = 0x4, fixed_abs, tag = 'smem constant byte address 0x4 - core index']
  #allocation1 [shape = 'u32[72,128]{1,0:T(1,128)}', space=vmem, size = 0x9000, scoped, tag = 'internal scratch']
  %s0 = inlined_call_operand.hbm [shape: f32[16,128], index: 0, kind: input, shape index: {}]
  %s1 = inlined_call_operand.hbm [shape: f32[16,128], index: 1, kind: output, shape index: {}]
  %s2 = sld [smem:[#allocation0]]
  $region18: #{tpu_custom_call.1} parent=0
    _
  %s4 = ssub.s32 1, %s2
  %s5 = scalar_select 0, %s4, %s2
  $region1: #{tpu_custom_call.1} parent=0
    #allocation2 [shape = 'u8[8192]{0}', space=vmem, size = 0x2000, scoped, tag = 'input window, operand 0, single buffered']
    #allocation3 [shape = 's32[1]{0}', space=sflag, size = 0x4, scoped, tag = 'scoped memory for tpu_custom_call.1']
    #allocation4 [shape = 's32[1]{0}', space=sflag, size = 0x4, scoped, tag = 'scoped memory for tpu_custom_call.1']
    #allocation5 [shape = 'u8[8192]{0}', space=vmem, size = 0x2000, scoped, tag = 'output window, operand 0, single buffered']
    %6 = vsyncpa [#allocation3], 0
    %7 = vsyncpa [#allocation4], 0
    // Predicated region
    $region2: #{tpu_custom_call.1} parent=1 // pred_check
      _
    $region3: #{tpu_custom_call.1} parent=1 // pred_check_branch
      %9 = sbr.rel (0) target = $region5
    $region4: #{tpu_custom_call.1} parent=1 // pred_region
      %11 = vsyncadd [#allocation3], 0
      %s12 = sshll.u32 %s0, 4
      %s13 = int_to_ptr.hbm [resolvable:$true] %s12
      %s14 = sshll.u32 [#allocation2], 4
      %s15 = int_to_ptr.vmem [resolvable:$true] %s14
      %20 = dma.hbm_to_vmem [thread:$0]  %s13, 256, %s15, [#allocation3], 128, 128, 8
    $region5: #{tpu_custom_call.1} parent=1 // pred_fallthru
      _
    // Predicated region
    $region6: #{tpu_custom_call.1} parent=1 // pred_check
      _
    $region7: #{tpu_custom_call.1} parent=1 // pred_check_branch
      %22 = sbr.rel (0) target = $region9
    $region8: #{tpu_custom_call.1} parent=1 // pred_region
      %24 = dma.done [#allocation3], 256
    $region9: #{tpu_custom_call.1} parent=1 // pred_fallthru
      _
    %v25 = vld [vmem:[#allocation2] sm:$0xff]
    %v26 = vld [vmem:[#allocation2 + $0x8] sm:$0xff]
    %v27 = vand.u32 2147483647, %v25
    %v28 = vand.u32 2147483647, %v26
    %v29 = vsub.f32 0.0, %v27
    %v30 = vsub.f32 0.0, %v28
    %v31 = vmul.f32 %v29, 1.442695
    %v32 = vpow.pop %v31
    %v33 = vmul.f32 %v30, 1.442695
    %v34 = vpow.pop %v33
    %v35 = vmul.f32 %v32, %v32
    %v36 = vmul.f32 %v34, %v34
    %vm37 = vcmp.ge.f32.partialorder %v25, 0.0
    %vm38 = vcmp.ge.f32.partialorder %v26, 0.0
    %v39 = vmul.f32 %v32, 2.0
    %v40 = vmul.f32 %v34, 2.0
    %v41 = vadd.f32 %v39, 1.0
    %v42 = vadd.f32 %v40, 1.0
    %v43 = vadd.f32 %v39, %v35
    %v44 = vadd.f32 %v40, %v36
    %v45 = vsel %vm37, %v41, %v43
    %v46 = vsel %vm38, %v42, %v44
    %v47 = vmul.f32 %v35, 2.0
    %v48 = vmul.f32 %v36, 2.0
    %v49 = vadd.f32 %v41, %v47
    %v50 = vadd.f32 %v42, %v48
    %v51 = vadd.f32 %v39, 2.0
    %v52 = vadd.f32 %v40, 2.0
    %v53 = vadd.f32 %v51, %v35
    %v54 = vadd.f32 %v52, %v36
    %v55 = vsel %vm37, %v49, %v53
    %v56 = vsel %vm38, %v50, %v54
    %v57 = vmul.f32 %v25, %v45
    %v58 = vmul.f32 %v26, %v46
    %v59 = vrcp.pop %v55
    %v60 = vmul.f32 %v55, %v59
    %v61 = vsub.f32 1.0, %v60
    %v62 = vmul.f32 %v59, %v61
    %v63 = vadd.f32 %v59, %v62
    %vm64 = vweird.f32 %v55
    %vm65 = vweird.f32 %v59
    %vm66 = vmor %vm64, %vm65
    %v67 = vsel %vm66, %v59, %v63
    %v68 = vand.u32 2147483647, %v55
    %vm69 = vcmp.eq.f32.partialorder %v68, 8.507059e+37
    %v70 = vand.u32 %v55, 2147483648
    %v71 = vor.u32 1.1754944e-38, %v70
    %v72 = vsel %vm69, %v71, %v67
    %v73 = vrcp.pop %v56
    %v74 = vmul.f32 %v56, %v73
    %v75 = vsub.f32 1.0, %v74
    %v76 = vmul.f32 %v73, %v75
    %v77 = vadd.f32 %v73, %v76
    %vm78 = vweird.f32 %v56
    %vm79 = vweird.f32 %v73
    %vm80 = vmor %vm78, %vm79
    %v81 = vsel %vm80, %v73, %v77
    %v82 = vand.u32 2147483647, %v56
    %vm83 = vcmp.eq.f32.partialorder %v82, 8.507059e+37
    %v84 = vand.u32 %v56, 2147483648
    %v85 = vor.u32 1.1754944e-38, %v84
    %v86 = vsel %vm83, %v85, %v81
    %v87 = vmul.f32 %v57, %v72
    %v88 = vmul.f32 %v58, %v86
    %89 = vst [vmem:[#allocation5] sm:$0xff] %v87
    %90 = vst [vmem:[#allocation5 + $0x8] sm:$0xff] %v88
    // Predicated region
    $region10: #{tpu_custom_call.1} parent=1 // pred_check
      _
    $region11: #{tpu_custom_call.1} parent=1 // pred_check_branch
      %92 = sbr.rel (0) target = $region13
    $region12: #{tpu_custom_call.1} parent=1 // pred_region
      %94 = vsyncadd [#allocation4], 0
      %s95 = sshll.u32 [#allocation5], 4
      %s96 = int_to_ptr.vmem [resolvable:$true] %s95
      %s97 = sshll.u32 %s1, 4
      %s98 = int_to_ptr.hbm [resolvable:$true] %s97
      %103 = dma.vmem_to_hbm [thread:$0]  %s96, 256, %s98, [#allocation4], 128, 128, 8
    $region13: #{tpu_custom_call.1} parent=1 // pred_fallthru
      _
    // Predicated region
    $region14: #{tpu_custom_call.1} parent=1 // pred_check
      _
    $region15: #{tpu_custom_call.1} parent=1 // pred_check_branch
      %105 = sbr.rel (0) target = $region17
    $region16: #{tpu_custom_call.1} parent=1 // pred_region
      %107 = dma.done [#allocation4], 256
    $region17: #{tpu_custom_call.1} parent=1 // pred_fallthru
      _
    %108 = vsyncpa [#allocation3], 1
    %109 = vsyncpa [#allocation4], 1

</llo_original>
